<compile_context>
chip_gen: v7x
topology: tpu7x:2x2x1
jax: 0.10.0
libtpu: 0.0.40
codegen_flags: <defaults>
</compile_context>

<pallas_src>
import jax
import jax.numpy as jnp
from jax.experimental import pallas as pl
from jax.experimental.pallas import tpu as pltpu

NEG_SLOPE = 0.01  # PyTorch LeakyReLU default

# Logical (PyTorch) dims
D_IN, D_H, D_OUT = 784, 200, 10
# Lane-aligned (zero-padded) dims used inside the kernel
P_H, P_OUT = 256, 128


def _leaky_relu(v):
    return jnp.where(v > 0, v, NEG_SLOPE * v)


def _round_up(n, m):
    return (n + m - 1) // m * m


def mlp_kernel(x_ref, w1_ref, b1_ref, w2_ref, b2_ref, w3_ref, b3_ref, o_ref):
    # Cast the streamed f32 tile to bf16 for the MXU; accumulate in f32 throughout.
    x = x_ref[...].astype(jnp.bfloat16)
    # Layer 1: (TB, 784) @ (784, 256)
    h = jnp.dot(x, w1_ref[...], preferred_element_type=jnp.float32)
    h = _leaky_relu(h + b1_ref[...])
    # Layer 2: (TB, 256) @ (256, 256)
    h = jnp.dot(h.astype(jnp.bfloat16), w2_ref[...], preferred_element_type=jnp.float32)
    h = _leaky_relu(h + b2_ref[...])
    # Layer 3: (TB, 256) @ (256, 128)
    h = jnp.dot(h.astype(jnp.bfloat16), w3_ref[...], preferred_element_type=jnp.float32)
    o_ref[...] = _leaky_relu(h + b3_ref[...]).astype(o_ref.dtype)


def prepare_params(params):
    """One-time prep: zero-pad logical params to lane-aligned shapes; weights -> bf16,
    biases stay f32. Padded entries are exactly 0 and LeakyReLU(0)=0, so padded units
    contribute nothing to the first 10 output columns."""
    w1 = jnp.zeros((D_IN, P_H), jnp.float32).at[:, :D_H].set(params["w1"])
    b1 = jnp.zeros((1, P_H), jnp.float32).at[:, :D_H].set(params["b1"])
    w2 = jnp.zeros((P_H, P_H), jnp.float32).at[:D_H, :D_H].set(params["w2"])
    b2 = jnp.zeros((1, P_H), jnp.float32).at[:, :D_H].set(params["b2"])
    w3 = jnp.zeros((P_H, P_OUT), jnp.float32).at[:D_H, :D_OUT].set(params["w3"])
    b3 = jnp.zeros((1, P_OUT), jnp.float32).at[:, :D_OUT].set(params["b3"])
    return (w1.astype(jnp.bfloat16), b1,
            w2.astype(jnp.bfloat16), b2,
            w3.astype(jnp.bfloat16), b3)


def _device_tile_config():
    """(max batch-tile rows, vmem_limit_bytes) by TPU generation."""
    kind = ""
    try:
        kind = jax.devices()[0].device_kind.lower()
    except Exception:
        pass
    if "v6" in kind or "trillium" in kind:
        return 4096, 64 * 1024 * 1024      # v6e: 128 MiB physical VMEM
    # v7x (64 MiB VMEM, 32 MiB scoped default) and v5e (raise 16 MiB scoped default)
    return 2048, 32 * 1024 * 1024


def _pick_tb(B, tb_max):
    if B <= 16:
        return B  # single block; block dim == full array dim is always legal
    # Multiple of 16 rows (bf16 sublane packing); aim for >= 2 grid steps so both
    # TensorCores get work under dimension_semantics=("parallel",).
    return min(tb_max, _round_up(pl.cdiv(B, 2), 16))


@jax.jit
def mlp_forward(x, prepared):
    """x: (B, 784) float32; prepared: output of prepare_params(). Returns (B, 10) f32."""
    B = x.shape[0]
    w1, b1, w2, b2, w3, b3 = prepared
    tb_max, vmem_limit = _device_tile_config()
    TB = _pick_tb(B, tb_max)
    grid = (pl.cdiv(B, TB),)

    # Constant block index -> stays resident in VMEM; single-buffered (no gain from 2).
    resident = lambda arr: pl.BlockSpec(arr.shape, lambda i: (0, 0),
                                        pipeline_mode=pl.Buffered(1))

    flops = 2 * B * (D_IN * P_H + P_H * P_H + P_H * P_OUT)
    bytes_accessed = (x.size * 4
                      + (w1.size + w2.size + w3.size) * 2
                      + (b1.size + b2.size + b3.size) * 4
                      + B * P_OUT * 2)

    out = pl.pallas_call(
        mlp_kernel,
        out_shape=jax.ShapeDtypeStruct((B, P_OUT), jnp.bfloat16),
        grid=grid,
        in_specs=[
            pl.BlockSpec((TB, D_IN), lambda i: (i, 0)),   # streamed f32 x tile
            resident(w1), resident(b1),                    # VMEM-resident weights/biases
            resident(w2), resident(b2),
            resident(w3), resident(b3),
        ],
        out_specs=pl.BlockSpec((TB, P_OUT), lambda i: (i, 0)),  # lane-dense 128-wide store
        compiler_params=pltpu.CompilerParams(
            dimension_semantics=("parallel",),
            vmem_limit_bytes=vmem_limit),
        cost_estimate=pl.CostEstimate(
            flops=flops, transcendentals=0, bytes_accessed=bytes_accessed),
    )(x, w1, b1, w2, b2, w3, b3)

    return out[:, :D_OUT].astype(jnp.float32)


def init_params(key):
    """PyTorch nn.Linear default init (uniform +-1/sqrt(fan_in)).
    Weights stored transposed: (in_features, out_features); biases (1, out_features)."""
    dims = [(D_IN, D_H), (D_H, D_H), (D_H, D_OUT)]
    params = {}
    for i, (fin, fout) in enumerate(dims, start=1):
        key, kw, kb = jax.random.split(key, 3)
        bound = 1.0 / jnp.sqrt(jnp.float32(fin))
        params[f"w{i}"] = jax.random.uniform(
            kw, (fin, fout), jnp.float32, minval=-bound, maxval=bound)
        params[f"b{i}"] = jax.random.uniform(
            kb, (1, fout), jnp.float32, minval=-bound, maxval=bound)
    return params


def mlp_reference(x, params):
    """Reference mirroring the kernel's numerics: bf16 matmul inputs, f32 accumulation,
    bf16 writeback."""
    q = lambda a: a.astype(jnp.bfloat16).astype(jnp.float32)
    hp = jax.lax.Precision.HIGHEST
    h = _leaky_relu(jnp.dot(q(x), q(params["w1"]), precision=hp) + params["b1"])
    h = _leaky_relu(jnp.dot(q(h), q(params["w2"]), precision=hp) + params["b2"])
    h = _leaky_relu(jnp.dot(q(h), q(params["w3"]), precision=hp) + params["b3"])
    return h.astype(jnp.bfloat16).astype(jnp.float32)


if __name__ == "__main__":
    key = jax.random.PRNGKey(0)
    kx, kp = jax.random.split(key)
    params = init_params(kp)
    prepared = prepare_params(params)

    # B=8: single-tile path. B=40: multi-step grid with a masked partial tail tile.
    for B in (8, 40):
        kx, sub = jax.random.split(kx)
        x = jax.random.normal(sub, (B, D_IN), jnp.float32)
        out = jax.block_until_ready(mlp_forward(x, prepared))
        ref = mlp_reference(x, params)
        assert out.shape == (B, D_OUT)
        err = float(jnp.max(jnp.abs(out - ref)))
        assert jnp.allclose(out, ref, atol=5e-2, rtol=5e-2), \
            f"B={B}: max abs err {err}"

    print("KERNEL_OK")
</pallas_src>

<mosaic_0001>
module attributes {stable_mosaic.version = 11 : i64} {
  func.func @mlp_kernel(%arg0: i32, %arg1: memref<8x784xf32, #tpu.memory_space<vmem>>, %arg2: memref<784x256xbf16, #tpu.memory_space<vmem>>, %arg3: memref<1x256xf32, #tpu.memory_space<vmem>>, %arg4: memref<256x256xbf16, #tpu.memory_space<vmem>>, %arg5: memref<1x256xf32, #tpu.memory_space<vmem>>, %arg6: memref<256x128xbf16, #tpu.memory_space<vmem>>, %arg7: memref<1x128xf32, #tpu.memory_space<vmem>>, %arg8: memref<8x128xbf16, #tpu.memory_space<vmem>>) attributes {dimension_semantics = [#tpu.dimension_semantics<parallel>], iteration_bounds = array<i64: 1>, scalar_prefetch = 0 : i64, scratch_operands = 0 : i64, tpu.core_type = #tpu.core_type<tc>, window_params = [{transform_indices = @transform_0, window_bounds = array<i64: 8, 784>}, {pipeline_mode = #tpu.pipeline_mode<synchronous>, transform_indices = @transform_1, window_bounds = array<i64: 784, 256>}, {pipeline_mode = #tpu.pipeline_mode<synchronous>, transform_indices = @transform_2, window_bounds = array<i64: 1, 256>}, {pipeline_mode = #tpu.pipeline_mode<synchronous>, transform_indices = @transform_3, window_bounds = array<i64: 256, 256>}, {pipeline_mode = #tpu.pipeline_mode<synchronous>, transform_indices = @transform_4, window_bounds = array<i64: 1, 256>}, {pipeline_mode = #tpu.pipeline_mode<synchronous>, transform_indices = @transform_5, window_bounds = array<i64: 256, 128>}, {pipeline_mode = #tpu.pipeline_mode<synchronous>, transform_indices = @transform_6, window_bounds = array<i64: 1, 128>}, {transform_indices = @transform_7, window_bounds = array<i64: 8, 128>}]} {
    %c0 = arith.constant 0 : index
    %c0_0 = arith.constant 0 : index
    %0 = vector.load %arg1[%c0, %c0_0] : memref<8x784xf32, #tpu.memory_space<vmem>>, vector<8x784xf32>
    %1 = arith.truncf %0 : vector<8x784xf32> to vector<8x784xbf16>
    %c0_1 = arith.constant 0 : index
    %c0_2 = arith.constant 0 : index
    %2 = vector.load %arg2[%c0_1, %c0_2] : memref<784x256xbf16, #tpu.memory_space<vmem>>, vector<784x256xbf16>
    %cst = arith.constant dense<0.000000e+00> : vector<8x256xf32>
    %3 = tpu.matmul %1, %2, %cst {dimension_numbers = #tpu.dot_dimension_numbers<[1], [0], [0], [1], [0, 0, 1, 1], [], []>} : vector<8x784xbf16>, vector<784x256xbf16>, vector<8x256xf32> -> vector<8x256xf32>
    %c0_3 = arith.constant 0 : index
    %c0_4 = arith.constant 0 : index
    %4 = vector.load %arg3[%c0_3, %c0_4] : memref<1x256xf32, #tpu.memory_space<vmem>>, vector<1x256xf32>
    %5 = vector.broadcast %4 : vector<1x256xf32> to vector<8x256xf32>
    %6 = arith.addf %3, %5 : vector<8x256xf32>
    %cst_5 = arith.constant 0.000000e+00 : f32
    %7 = vector.broadcast %cst_5 : f32 to vector<8x256xf32>
    %8 = arith.cmpf ogt, %6, %7 : vector<8x256xf32>
    %cst_6 = arith.constant 0.00999999977 : f32
    %9 = vector.broadcast %cst_6 : f32 to vector<8x256xf32>
    %10 = arith.mulf %9, %6 : vector<8x256xf32>
    %11 = arith.select %8, %6, %10 : vector<8x256xi1>, vector<8x256xf32>
    %12 = arith.truncf %11 : vector<8x256xf32> to vector<8x256xbf16>
    %c0_7 = arith.constant 0 : index
    %c0_8 = arith.constant 0 : index
    %13 = vector.load %arg4[%c0_7, %c0_8] : memref<256x256xbf16, #tpu.memory_space<vmem>>, vector<256x256xbf16>
    %cst_9 = arith.constant dense<0.000000e+00> : vector<8x256xf32>
    %14 = tpu.matmul %12, %13, %cst_9 {dimension_numbers = #tpu.dot_dimension_numbers<[1], [0], [0], [1], [0, 0, 1, 1], [], []>} : vector<8x256xbf16>, vector<256x256xbf16>, vector<8x256xf32> -> vector<8x256xf32>
    %c0_10 = arith.constant 0 : index
    %c0_11 = arith.constant 0 : index
    %15 = vector.load %arg5[%c0_10, %c0_11] : memref<1x256xf32, #tpu.memory_space<vmem>>, vector<1x256xf32>
    %16 = vector.broadcast %15 : vector<1x256xf32> to vector<8x256xf32>
    %17 = arith.addf %14, %16 : vector<8x256xf32>
    %cst_12 = arith.constant 0.000000e+00 : f32
    %18 = vector.broadcast %cst_12 : f32 to vector<8x256xf32>
    %19 = arith.cmpf ogt, %17, %18 : vector<8x256xf32>
    %cst_13 = arith.constant 0.00999999977 : f32
    %20 = vector.broadcast %cst_13 : f32 to vector<8x256xf32>
    %21 = arith.mulf %20, %17 : vector<8x256xf32>
    %22 = arith.select %19, %17, %21 : vector<8x256xi1>, vector<8x256xf32>
    %23 = arith.truncf %22 : vector<8x256xf32> to vector<8x256xbf16>
    %c0_14 = arith.constant 0 : index
    %c0_15 = arith.constant 0 : index
    %24 = vector.load %arg6[%c0_14, %c0_15] : memref<256x128xbf16, #tpu.memory_space<vmem>>, vector<256x128xbf16>
    %cst_16 = arith.constant dense<0.000000e+00> : vector<8x128xf32>
    %25 = tpu.matmul %23, %24, %cst_16 {dimension_numbers = #tpu.dot_dimension_numbers<[1], [0], [0], [1], [0, 0, 1, 1], [], []>} : vector<8x256xbf16>, vector<256x128xbf16>, vector<8x128xf32> -> vector<8x128xf32>
    %c0_17 = arith.constant 0 : index
    %c0_18 = arith.constant 0 : index
    %26 = vector.load %arg7[%c0_17, %c0_18] : memref<1x128xf32, #tpu.memory_space<vmem>>, vector<1x128xf32>
    %27 = vector.broadcast %26 : vector<1x128xf32> to vector<8x128xf32>
    %28 = arith.addf %25, %27 : vector<8x128xf32>
    %cst_19 = arith.constant 0.000000e+00 : f32
    %29 = vector.broadcast %cst_19 : f32 to vector<8x128xf32>
    %30 = arith.cmpf ogt, %28, %29 : vector<8x128xf32>
    %cst_20 = arith.constant 0.00999999977 : f32
    %31 = vector.broadcast %cst_20 : f32 to vector<8x128xf32>
    %32 = arith.mulf %31, %28 : vector<8x128xf32>
    %33 = arith.select %30, %28, %32 : vector<8x128xi1>, vector<8x128xf32>
    %34 = arith.truncf %33 : vector<8x128xf32> to vector<8x128xbf16>
    %c0_21 = arith.constant 0 : index
    %c0_22 = arith.constant 0 : index
    %35 = vector.load %arg8[%c0_21, %c0_22] : memref<8x128xbf16, #tpu.memory_space<vmem>>, vector<8x128xbf16>
    tpu.vector_store %arg8[%c0_21, %c0_22], %34 {strides = array<i32>} : memref<8x128xbf16, #tpu.memory_space<vmem>>, vector<8x128xbf16>,
    return
  }
  func.func @transform_0(%arg0: i32) -> (i32, i32) {
    %c0_i32 = arith.constant 0 : i32
    %c0_i32_0 = arith.constant 0 : i32
    return %arg0, %c0_i32 : i32, i32
  }
  func.func @transform_1(%arg0: i32) -> (i32, i32) {
    %c0_i32 = arith.constant 0 : i32
    %c0_i32_0 = arith.constant 0 : i32
    %c0_i32_1 = arith.constant 0 : i32
    return %c0_i32, %c0_i32_0 : i32, i32
  }
  func.func @transform_2(%arg0: i32) -> (i32, i32) {
    %c0_i32 = arith.constant 0 : i32
    %c0_i32_0 = arith.constant 0 : i32
    %c0_i32_1 = arith.constant 0 : i32
    return %c0_i32, %c0_i32_0 : i32, i32
  }
  func.func @transform_3(%arg0: i32) -> (i32, i32) {
    %c0_i32 = arith.constant 0 : i32
    %c0_i32_0 = arith.constant 0 : i32
    %c0_i32_1 = arith.constant 0 : i32
    return %c0_i32, %c0_i32_0 : i32, i32
  }
  func.func @transform_4(%arg0: i32) -> (i32, i32) {
    %c0_i32 = arith.constant 0 : i32
    %c0_i32_0 = arith.constant 0 : i32
    %c0_i32_1 = arith.constant 0 : i32
    return %c0_i32, %c0_i32_0 : i32, i32
  }
  func.func @transform_5(%arg0: i32) -> (i32, i32) {
    %c0_i32 = arith.constant 0 : i32
    %c0_i32_0 = arith.constant 0 : i32
    %c0_i32_1 = arith.constant 0 : i32
    return %c0_i32, %c0_i32_0 : i32, i32
  }
  func.func @transform_6(%arg0: i32) -> (i32, i32) {
    %c0_i32 = arith.constant 0 : i32
    %c0_i32_0 = arith.constant 0 : i32
    %c0_i32_1 = arith.constant 0 : i32
    return %c0_i32, %c0_i32_0 : i32, i32
  }
  func.func @transform_7(%arg0: i32) -> (i32, i32) {
    %c0_i32 = arith.constant 0 : i32
    %c0_i32_0 = arith.constant 0 : i32
    return %arg0, %c0_i32 : i32, i32
  }
}

</mosaic_0001>

<llo_original>
// kernel: mlp_forward.1
$region0: #{mlp_forward.1}
  #allocation0 [shape = 'u32[]', space=smem, size = 0x4, offset = 0x4, fixed_abs, tag = 'smem constant byte address 0x4 - core index']
  #allocation1 [shape = 'u32[144,128]{1,0:T(1,128)}', space=vmem, size = 0x12000, scoped, tag = 'internal scratch']
  %s0 = inlined_call_operand.hbm [shape: f32[8,784], index: 0, kind: input, shape index: {}]
  %s1 = inlined_call_operand.hbm [shape: bf16[784,256], index: 1, kind: input, shape index: {}]
  %s2 = inlined_call_operand.vmem [shape: f32[1,256], index: 2, kind: input, shape index: {}]
  %s3 = inlined_call_operand.hbm [shape: bf16[256,256], index: 3, kind: input, shape index: {}]
  %s4 = inlined_call_operand.vmem [shape: f32[1,256], index: 4, kind: input, shape index: {}]
  %s5 = inlined_call_operand.hbm [shape: bf16[256,128], index: 5, kind: input, shape index: {}]
  %s6 = inlined_call_operand.vmem [shape: f32[1,128], index: 6, kind: input, shape index: {}]
  %s7 = inlined_call_operand.vmem [shape: bf16[8,128], index: 7, kind: output, shape index: {}]
  %s8 = sld [smem:[#allocation0]]
  $region54: #{mlp_forward.1} parent=0
    _
  %s10 = ssub.s32 1, %s8
  %s11 = scalar_select 0, %s10, %s8
  $region1: #{mlp_forward.1} parent=0
    #allocation2 [shape = 'u8[28672]{0}', space=vmem, size = 0x7000, scoped, tag = 'input window, operand 0, single buffered']
    #allocation3 [shape = 's32[1]{0}', space=sflag, size = 0x4, scoped, tag = 'scoped memory for mlp_forward.1']
    #allocation4 [shape = 'u8[401408]{0}', space=vmem, size = 0x62000, scoped, tag = 'input window, operand 1, single buffered']
    #allocation5 [shape = 's32[1]{0}', space=sflag, size = 0x4, scoped, tag = 'scoped memory for mlp_forward.1']
    #allocation6 [shape = 'u8[131072]{0}', space=vmem, size = 0x20000, scoped, tag = 'input window, operand 3, single buffered']
    #allocation7 [shape = 'u8[65536]{0}', space=vmem, size = 0x10000, scoped, tag = 'input window, operand 5, single buffered']
    #allocation8 [shape = 's32[1]{0}', space=sflag, size = 0x4, scoped, tag = 'scoped memory for mlp_forward.1']
    %12 = vsyncpa [#allocation3], 0
    %13 = vsyncpa [#allocation5], 0
    %14 = vsyncpa [#allocation8], 0
    // Predicated region
    $region2: #{mlp_forward.1} parent=1 // pred_check
      _
    $region3: #{mlp_forward.1} parent=1 // pred_check_branch
      %16 = sbr.rel (0) target = $region5
    $region4: #{mlp_forward.1} parent=1 // pred_region
      %s18 = ssub.s32 896, 896
      %19 = vsyncadd [#allocation3], %s18
      %s21 = sshll.u32 [#allocation2], 4
      %s22 = int_to_ptr.vmem [resolvable:$true] %s21
      %24 = dma.hbm_to_vmem [thread:$0]  %s0, 896, %s22, [#allocation3]
    $region5: #{mlp_forward.1} parent=1 // pred_fallthru
      _
    // Predicated region
    $region6: #{mlp_forward.1} parent=1 // pred_check
      _
    $region7: #{mlp_forward.1} parent=1 // pred_check_branch
      %26 = sbr.rel (0) target = $region9
    $region8: #{mlp_forward.1} parent=1 // pred_region
      %s28 = ssub.s32 12544, 12544
      %29 = vsyncadd [#allocation5], %s28
      %s30 = sshll.u32 [#allocation4], 4
      %s31 = int_to_ptr.vmem [resolvable:$true] %s30
      %36 = dma.hbm_to_vmem [thread:$0]  %s1, 12544, %s31, [#allocation5], 128, 128, 8
    $region9: #{mlp_forward.1} parent=1 // pred_fallthru
      _
    // Predicated region
    $region10: #{mlp_forward.1} parent=1 // pred_check
      _
    $region11: #{mlp_forward.1} parent=1 // pred_check_branch
      %38 = sbr.rel (0) target = $region13
    $region12: #{mlp_forward.1} parent=1 // pred_region
      _
    $region13: #{mlp_forward.1} parent=1 // pred_fallthru
      _
    // Predicated region
    $region14: #{mlp_forward.1} parent=1 // pred_check
      _
    $region15: #{mlp_forward.1} parent=1 // pred_check_branch
      %40 = sbr.rel (0) target = $region17
    $region16: #{mlp_forward.1} parent=1 // pred_region
      %s42 = ssub.s32 4096, 4096
      %43 = vsyncadd [#allocation5], %s42
      %s44 = sshll.u32 [#allocation6], 4
      %s45 = int_to_ptr.vmem [resolvable:$true] %s44
      %50 = dma.hbm_to_vmem [thread:$0]  %s3, 4096, %s45, [#allocation5], 128, 128, 8
    $region17: #{mlp_forward.1} parent=1 // pred_fallthru
      _
    // Predicated region
    $region18: #{mlp_forward.1} parent=1 // pred_check
      _
    $region19: #{mlp_forward.1} parent=1 // pred_check_branch
      %52 = sbr.rel (0) target = $region21
    $region20: #{mlp_forward.1} parent=1 // pred_region
      _
    $region21: #{mlp_forward.1} parent=1 // pred_fallthru
      _
    // Predicated region
    $region22: #{mlp_forward.1} parent=1 // pred_check
      _
    $region23: #{mlp_forward.1} parent=1 // pred_check_branch
      %54 = sbr.rel (0) target = $region25
    $region24: #{mlp_forward.1} parent=1 // pred_region
      %s56 = ssub.s32 2048, 2048
      %57 = vsyncadd [#allocation8], %s56
      %s58 = sshll.u32 [#allocation7], 4
      %s59 = int_to_ptr.vmem [resolvable:$true] %s58
      %64 = dma.hbm_to_vmem [thread:$0]  %s5, 2048, %s59, [#allocation8], 64, 64, 4
    $region25: #{mlp_forward.1} parent=1 // pred_fallthru
      _
    // Predicated region
    $region26: #{mlp_forward.1} parent=1 // pred_check
      _
    $region27: #{mlp_forward.1} parent=1 // pred_check_branch
      %66 = sbr.rel (0) target = $region29
    $region28: #{mlp_forward.1} parent=1 // pred_region
      _
    $region29: #{mlp_forward.1} parent=1 // pred_fallthru
      _
    // Predicated region
    $region30: #{mlp_forward.1} parent=1 // pred_check
      _
    $region31: #{mlp_forward.1} parent=1 // pred_check_branch
      %68 = sbr.rel (0) target = $region33
    $region32: #{mlp_forward.1} parent=1 // pred_region
      %69 = dma.done [#allocation3], 896
    $region33: #{mlp_forward.1} parent=1 // pred_fallthru
      _
    // Predicated region
    $region34: #{mlp_forward.1} parent=1 // pred_check
      _
    $region35: #{mlp_forward.1} parent=1 // pred_check_branch
      %71 = sbr.rel (0) target = $region37
    $region36: #{mlp_forward.1} parent=1 // pred_region
      %72 = dma.done [#allocation5], 12544
    $region37: #{mlp_forward.1} parent=1 // pred_fallthru
      _
    // Predicated region
    $region38: #{mlp_forward.1} parent=1 // pred_check
      _
    $region39: #{mlp_forward.1} parent=1 // pred_check_branch
      %74 = sbr.rel (0) target = $region41
    $region40: #{mlp_forward.1} parent=1 // pred_region
      %75 = dma.done [#allocation5], 4096
    $region41: #{mlp_forward.1} parent=1 // pred_fallthru
      _
    // Predicated region
    $region42: #{mlp_forward.1} parent=1 // pred_check
      _
    $region43: #{mlp_forward.1} parent=1 // pred_check_branch
      %77 = sbr.rel (0) target = $region45
    $region44: #{mlp_forward.1} parent=1 // pred_region
      %78 = dma.done [#allocation8], 2048
    $region45: #{mlp_forward.1} parent=1 // pred_fallthru
      _
    %v80 = vld [vmem:[#allocation2] sm:$0xff]
    %v81 = vld [vmem:[#allocation2 + $0x8] sm:$0xff]
    %v82 = vld [vmem:[#allocation2 + $0x10] sm:$0xff]
    %v83 = vld [vmem:[#allocation2 + $0x18] sm:$0xff]
    %v84 = vld [vmem:[#allocation2 + $0x20] sm:$0xff]
    %v85 = vld [vmem:[#allocation2 + $0x28] sm:$0xff]
    %v86 = vld [vmem:[#allocation2 + $0x30] sm:$0xff]
    %v87 = vpack.c.bf16 %v80, %v80
    %v88 = vpack.c.bf16 %v81, %v81
    %v89 = vpack.c.bf16 %v82, %v82
    %v90 = vpack.c.bf16 %v83, %v83
    %v91 = vpack.c.bf16 %v84, %v84
    %v92 = vpack.c.bf16 %v85, %v85
    %v93 = vpack.c.bf16 %v86, %v86
    %v94 = vld [vmem:[#allocation4] sm:$0xff]
    %v95 = vld [vmem:[#allocation4 + $0x8] sm:$0xff]
    %v96 = vld [vmem:[#allocation4 + $0x10] sm:$0xff]
    %v97 = vld [vmem:[#allocation4 + $0x18] sm:$0xff]
    %v98 = vld [vmem:[#allocation4 + $0x20] sm:$0xff]
    %v99 = vld [vmem:[#allocation4 + $0x28] sm:$0xff]
    %v100 = vld [vmem:[#allocation4 + $0x30] sm:$0xff]
    %v101 = vld [vmem:[#allocation4 + $0x38] sm:$0xff]
    %v102 = vld [vmem:[#allocation4 + $0x40] sm:$0xff]
    %v103 = vld [vmem:[#allocation4 + $0x48] sm:$0xff]
    %v104 = vld [vmem:[#allocation4 + $0x50] sm:$0xff]
    %v105 = vld [vmem:[#allocation4 + $0x58] sm:$0xff]
    %v106 = vld [vmem:[#allocation4 + $0x60] sm:$0xff]
    %v107 = vld [vmem:[#allocation4 + $0x68] sm:$0xff]
    %v108 = vld [vmem:[#allocation4 + $0x70] sm:$0xff]
    %v109 = vld [vmem:[#allocation4 + $0x78] sm:$0xff]
    %v110 = vld [vmem:[#allocation4 + $0x80] sm:$0xff]
    %v111 = vld [vmem:[#allocation4 + $0x88] sm:$0xff]
    %v112 = vld [vmem:[#allocation4 + $0x90] sm:$0xff]
    %v113 = vld [vmem:[#allocation4 + $0x98] sm:$0xff]
    %v114 = vld [vmem:[#allocation4 + $0xa0] sm:$0xff]
    %v115 = vld [vmem:[#allocation4 + $0xa8] sm:$0xff]
    %v116 = vld [vmem:[#allocation4 + $0xb0] sm:$0xff]
    %v117 = vld [vmem:[#allocation4 + $0xb8] sm:$0xff]
    %v118 = vld [vmem:[#allocation4 + $0xc0] sm:$0xff]
    %v119 = vld [vmem:[#allocation4 + $0xc8] sm:$0xff]
    %v120 = vld [vmem:[#allocation4 + $0xd0] sm:$0xff]
    %v121 = vld [vmem:[#allocation4 + $0xd8] sm:$0xff]
    %v122 = vld [vmem:[#allocation4 + $0xe0] sm:$0xff]
    %v123 = vld [vmem:[#allocation4 + $0xe8] sm:$0xff]
    %v124 = vld [vmem:[#allocation4 + $0xf0] sm:$0xff]
    %v125 = vld [vmem:[#allocation4 + $0xf8] sm:$0xff]
    %v126 = vld [vmem:[#allocation4 + $0x100] sm:$0xff]
    %v127 = vld [vmem:[#allocation4 + $0x108] sm:$0xff]
    %v128 = vld [vmem:[#allocation4 + $0x110] sm:$0xff]
    %v129 = vld [vmem:[#allocation4 + $0x118] sm:$0xff]
    %v130 = vld [vmem:[#allocation4 + $0x120] sm:$0xff]
    %v131 = vld [vmem:[#allocation4 + $0x128] sm:$0xff]
    %v132 = vld [vmem:[#allocation4 + $0x130] sm:$0xff]
    %v133 = vld [vmem:[#allocation4 + $0x138] sm:$0xff]
    %v134 = vld [vmem:[#allocation4 + $0x140] sm:$0xff]
    %v135 = vld [vmem:[#allocation4 + $0x148] sm:$0xff]
    %v136 = vld [vmem:[#allocation4 + $0x150] sm:$0xff]
    %v137 = vld [vmem:[#allocation4 + $0x158] sm:$0xff]
    %v138 = vld [vmem:[#allocation4 + $0x160] sm:$0xff]
    %v139 = vld [vmem:[#allocation4 + $0x168] sm:$0xff]
    %v140 = vld [vmem:[#allocation4 + $0x170] sm:$0xff]
    %v141 = vld [vmem:[#allocation4 + $0x178] sm:$0xff]
    %v142 = vld [vmem:[#allocation4 + $0x180] sm:$0xff]
    %v143 = vld [vmem:[#allocation4 + $0x188] sm:$0xff]
    %v144 = vld [vmem:[#allocation4 + $0x190] sm:$0xff]
    %v145 = vld [vmem:[#allocation4 + $0x198] sm:$0xff]
    %v146 = vld [vmem:[#allocation4 + $0x1a0] sm:$0xff]
    %v147 = vld [vmem:[#allocation4 + $0x1a8] sm:$0xff]
    %v148 = vld [vmem:[#allocation4 + $0x1b0] sm:$0xff]
    %v149 = vld [vmem:[#allocation4 + $0x1b8] sm:$0xff]
    %v150 = vld [vmem:[#allocation4 + $0x1c0] sm:$0xff]
    %v151 = vld [vmem:[#allocation4 + $0x1c8] sm:$0xff]
    %v152 = vld [vmem:[#allocation4 + $0x1d0] sm:$0xff]
    %v153 = vld [vmem:[#allocation4 + $0x1d8] sm:$0xff]
    %v154 = vld [vmem:[#allocation4 + $0x1e0] sm:$0xff]
    %v155 = vld [vmem:[#allocation4 + $0x1e8] sm:$0xff]
    %v156 = vld [vmem:[#allocation4 + $0x1f0] sm:$0xff]
    %v157 = vld [vmem:[#allocation4 + $0x1f8] sm:$0xff]
    %v158 = vld [vmem:[#allocation4 + $0x200] sm:$0xff]
    %v159 = vld [vmem:[#allocation4 + $0x208] sm:$0xff]
    %v160 = vld [vmem:[#allocation4 + $0x210] sm:$0xff]
    %v161 = vld [vmem:[#allocation4 + $0x218] sm:$0xff]
    %v162 = vld [vmem:[#allocation4 + $0x220] sm:$0xff]
    %v163 = vld [vmem:[#allocation4 + $0x228] sm:$0xff]
    %v164 = vld [vmem:[#allocation4 + $0x230] sm:$0xff]
    %v165 = vld [vmem:[#allocation4 + $0x238] sm:$0xff]
    %v166 = vld [vmem:[#allocation4 + $0x240] sm:$0xff]
    %v167 = vld [vmem:[#allocation4 + $0x248] sm:$0xff]
    %v168 = vld [vmem:[#allocation4 + $0x250] sm:$0xff]
    %v169 = vld [vmem:[#allocation4 + $0x258] sm:$0xff]
    %v170 = vld [vmem:[#allocation4 + $0x260] sm:$0xff]
    %v171 = vld [vmem:[#allocation4 + $0x268] sm:$0xff]
    %v172 = vld [vmem:[#allocation4 + $0x270] sm:$0xff]
    %v173 = vld [vmem:[#allocation4 + $0x278] sm:$0xff]
    %v174 = vld [vmem:[#allocation4 + $0x280] sm:$0xff]
    %v175 = vld [vmem:[#allocation4 + $0x288] sm:$0xff]
    %v176 = vld [vmem:[#allocation4 + $0x290] sm:$0xff]
    %v177 = vld [vmem:[#allocation4 + $0x298] sm:$0xff]
    %v178 = vld [vmem:[#allocation4 + $0x2a0] sm:$0xff]
    %v179 = vld [vmem:[#allocation4 + $0x2a8] sm:$0xff]
    %v180 = vld [vmem:[#allocation4 + $0x2b0] sm:$0xff]
    %v181 = vld [vmem:[#allocation4 + $0x2b8] sm:$0xff]
    %v182 = vld [vmem:[#allocation4 + $0x2c0] sm:$0xff]
    %v183 = vld [vmem:[#allocation4 + $0x2c8] sm:$0xff]
    %v184 = vld [vmem:[#allocation4 + $0x2d0] sm:$0xff]
    %v185 = vld [vmem:[#allocation4 + $0x2d8] sm:$0xff]
    %v186 = vld [vmem:[#allocation4 + $0x2e0] sm:$0xff]
    %v187 = vld [vmem:[#allocation4 + $0x2e8] sm:$0xff]
    %v188 = vld [vmem:[#allocation4 + $0x2f0] sm:$0xff]
    %v189 = vld [vmem:[#allocation4 + $0x2f8] sm:$0xff]
    %v190 = vld [vmem:[#allocation4 + $0x300] sm:$0xff]
    %v191 = vld [vmem:[#allocation4 + $0x308] sm:$0xff]
    %v192 = vld [vmem:[%s2] sm:$0x3]
    %v194 = vlaneseq
    %v195 = vshrl.u32 %v194, 7
    %v196 = vsub.s32 0, %v195
    %v197 = vrot.slane %v192, %v196
    %v198 = vlaneseq
    %v199 = vshrl.u32 %v198, 7
    %v200 = vsub.s32 1, %v199
    %v201 = vrot.slane %v192, %v200
    %v302 = vunpack.c.l.b16 %v94
    %v303 = vunpack.c.h.b16 %v94
    %v304 = vunpack.c.l.b16 %v95
    %v305 = vunpack.c.h.b16 %v95
    %v306 = vunpack.c.l.b16 %v96
    %v307 = vunpack.c.h.b16 %v96
    %v308 = vunpack.c.l.b16 %v97
    %v309 = vunpack.c.h.b16 %v97
    %v310 = vunpack.c.l.b16 %v98
    %v311 = vunpack.c.h.b16 %v98
    %v312 = vunpack.c.l.b16 %v99
    %v313 = vunpack.c.h.b16 %v99
    %v314 = vunpack.c.l.b16 %v100
    %v315 = vunpack.c.h.b16 %v100
    %v316 = vunpack.c.l.b16 %v101
    %v317 = vunpack.c.h.b16 %v101
    %v318 = vunpack.c.l.b16 %v102
    %v319 = vunpack.c.h.b16 %v102
    %v320 = vunpack.c.l.b16 %v103
    %v321 = vunpack.c.h.b16 %v103
    %v322 = vunpack.c.l.b16 %v104
    %v323 = vunpack.c.h.b16 %v104
    %v324 = vunpack.c.l.b16 %v105
    %v325 = vunpack.c.h.b16 %v105
    %v326 = vunpack.c.l.b16 %v106
    %v327 = vunpack.c.h.b16 %v106
    %v328 = vunpack.c.l.b16 %v107
    %v329 = vunpack.c.h.b16 %v107
    %v330 = vunpack.c.l.b16 %v108
    %v331 = vunpack.c.h.b16 %v108
    %v332 = vunpack.c.l.b16 %v109
    %v333 = vunpack.c.h.b16 %v109
    %v334 = vunpack.c.l.b16 %v110
    %v335 = vunpack.c.h.b16 %v110
    %v336 = vunpack.c.l.b16 %v111
    %v337 = vunpack.c.h.b16 %v111
    %v338 = vunpack.c.l.b16 %v112
    %v339 = vunpack.c.h.b16 %v112
    %v340 = vunpack.c.l.b16 %v113
    %v341 = vunpack.c.h.b16 %v113
    %v342 = vunpack.c.l.b16 %v114
    %v343 = vunpack.c.h.b16 %v114
    %v344 = vunpack.c.l.b16 %v115
    %v345 = vunpack.c.h.b16 %v115
    %v346 = vunpack.c.l.b16 %v116
    %v347 = vunpack.c.h.b16 %v116
    %v348 = vunpack.c.l.b16 %v117
    %v349 = vunpack.c.h.b16 %v117
    %v350 = vunpack.c.l.b16 %v118
    %v351 = vunpack.c.h.b16 %v118
    %v352 = vunpack.c.l.b16 %v119
    %v353 = vunpack.c.h.b16 %v119
    %v354 = vunpack.c.l.b16 %v120
    %v355 = vunpack.c.h.b16 %v120
    %v356 = vunpack.c.l.b16 %v121
    %v357 = vunpack.c.h.b16 %v121
    %v358 = vunpack.c.l.b16 %v122
    %v359 = vunpack.c.h.b16 %v122
    %v360 = vunpack.c.l.b16 %v123
    %v361 = vunpack.c.h.b16 %v123
    %v362 = vunpack.c.l.b16 %v124
    %v363 = vunpack.c.h.b16 %v124
    %v364 = vunpack.c.l.b16 %v125
    %v365 = vunpack.c.h.b16 %v125
    %v366 = vunpack.c.l.b16 %v126
    %v367 = vunpack.c.h.b16 %v126
    %v368 = vunpack.c.l.b16 %v127
    %v369 = vunpack.c.h.b16 %v127
    %v370 = vunpack.c.l.b16 %v128
    %v371 = vunpack.c.h.b16 %v128
    %v372 = vunpack.c.l.b16 %v129
    %v373 = vunpack.c.h.b16 %v129
    %v374 = vunpack.c.l.b16 %v130
    %v375 = vunpack.c.h.b16 %v130
    %v376 = vunpack.c.l.b16 %v131
    %v377 = vunpack.c.h.b16 %v131
    %v378 = vunpack.c.l.b16 %v132
    %v379 = vunpack.c.h.b16 %v132
    %v380 = vunpack.c.l.b16 %v133
    %v381 = vunpack.c.h.b16 %v133
    %v382 = vunpack.c.l.b16 %v134
    %v383 = vunpack.c.h.b16 %v134
    %v384 = vunpack.c.l.b16 %v135
    %v385 = vunpack.c.h.b16 %v135
    %v386 = vunpack.c.l.b16 %v136
    %v387 = vunpack.c.h.b16 %v136
    %v388 = vunpack.c.l.b16 %v137
    %v389 = vunpack.c.h.b16 %v137
    %v390 = vunpack.c.l.b16 %v138
    %v391 = vunpack.c.h.b16 %v138
    %v392 = vunpack.c.l.b16 %v139
    %v393 = vunpack.c.h.b16 %v139
    %v394 = vunpack.c.l.b16 %v140
    %v395 = vunpack.c.h.b16 %v140
    %v396 = vunpack.c.l.b16 %v141
    %v397 = vunpack.c.h.b16 %v141
    %v398 = vunpack.c.l.b16 %v142
    %v399 = vunpack.c.h.b16 %v142
    %v400 = vunpack.c.l.b16 %v143
    %v401 = vunpack.c.h.b16 %v143
    %v402 = vunpack.c.l.b16 %v144
    %v403 = vunpack.c.h.b16 %v144
    %v404 = vunpack.c.l.b16 %v145
    %v405 = vunpack.c.h.b16 %v145
    %v406 = vunpack.c.l.b16 %v146
    %v407 = vunpack.c.h.b16 %v146
    %v408 = vunpack.c.l.b16 %v147
    %v409 = vunpack.c.h.b16 %v147
    %v410 = vunpack.c.l.b16 %v148
    %v411 = vunpack.c.h.b16 %v148
    %v412 = vunpack.c.l.b16 %v149
    %v413 = vunpack.c.h.b16 %v149
    %v414 = vunpack.c.l.b16 %v150
    %v415 = vunpack.c.h.b16 %v150
    %v416 = vunpack.c.l.b16 %v151
    %v417 = vunpack.c.h.b16 %v151
    %v418 = vunpack.c.l.b16 %v152
    %v419 = vunpack.c.h.b16 %v152
    %v420 = vunpack.c.l.b16 %v153
    %v421 = vunpack.c.h.b16 %v153
    %v422 = vunpack.c.l.b16 %v154
    %v423 = vunpack.c.h.b16 %v154
    %v424 = vunpack.c.l.b16 %v155
    %v425 = vunpack.c.h.b16 %v155
    %v426 = vunpack.c.l.b16 %v156
    %v427 = vunpack.c.h.b16 %v156
    %v428 = vunpack.c.l.b16 %v157
    %v429 = vunpack.c.h.b16 %v157
    %v430 = vunpack.c.l.b16 %v158
    %v431 = vunpack.c.h.b16 %v158
    %v432 = vunpack.c.l.b16 %v159
    %v433 = vunpack.c.h.b16 %v159
    %v434 = vunpack.c.l.b16 %v160
    %v435 = vunpack.c.h.b16 %v160
    %v436 = vunpack.c.l.b16 %v161
    %v437 = vunpack.c.h.b16 %v161
    %v438 = vunpack.c.l.b16 %v162
    %v439 = vunpack.c.h.b16 %v162
    %v440 = vunpack.c.l.b16 %v163
    %v441 = vunpack.c.h.b16 %v163
    %v442 = vunpack.c.l.b16 %v164
    %v443 = vunpack.c.h.b16 %v164
    %v444 = vunpack.c.l.b16 %v165
    %v445 = vunpack.c.h.b16 %v165
    %v446 = vunpack.c.l.b16 %v166
    %v447 = vunpack.c.h.b16 %v166
    %v448 = vunpack.c.l.b16 %v167
    %v449 = vunpack.c.h.b16 %v167
    %v450 = vunpack.c.l.b16 %v168
    %v451 = vunpack.c.h.b16 %v168
    %v452 = vunpack.c.l.b16 %v169
    %v453 = vunpack.c.h.b16 %v169
    %v454 = vunpack.c.l.b16 %v170
    %v455 = vunpack.c.h.b16 %v170
    %v456 = vunpack.c.l.b16 %v171
    %v457 = vunpack.c.h.b16 %v171
    %v458 = vunpack.c.l.b16 %v172
    %v459 = vunpack.c.h.b16 %v172
    %v460 = vunpack.c.l.b16 %v173
    %v461 = vunpack.c.h.b16 %v173
    %v462 = vunpack.c.l.b16 %v174
    %v463 = vunpack.c.h.b16 %v174
    %v464 = vunpack.c.l.b16 %v175
    %v465 = vunpack.c.h.b16 %v175
    %v466 = vunpack.c.l.b16 %v176
    %v467 = vunpack.c.h.b16 %v176
    %v468 = vunpack.c.l.b16 %v177
    %v469 = vunpack.c.h.b16 %v177
    %v470 = vunpack.c.l.b16 %v178
    %v471 = vunpack.c.h.b16 %v178
    %v472 = vunpack.c.l.b16 %v179
    %v473 = vunpack.c.h.b16 %v179
    %v474 = vunpack.c.l.b16 %v180
    %v475 = vunpack.c.h.b16 %v180
    %v476 = vunpack.c.l.b16 %v181
    %v477 = vunpack.c.h.b16 %v181
    %v478 = vunpack.c.l.b16 %v182
    %v479 = vunpack.c.h.b16 %v182
    %v480 = vunpack.c.l.b16 %v183
    %v481 = vunpack.c.h.b16 %v183
    %v482 = vunpack.c.l.b16 %v184
    %v483 = vunpack.c.h.b16 %v184
    %v484 = vunpack.c.l.b16 %v185
    %v485 = vunpack.c.h.b16 %v185
    %v486 = vunpack.c.l.b16 %v186
    %v487 = vunpack.c.h.b16 %v186
    %v488 = vunpack.c.l.b16 %v187
    %v489 = vunpack.c.h.b16 %v187
    %v490 = vunpack.c.l.b16 %v188
    %v491 = vunpack.c.h.b16 %v188
    %v492 = vunpack.c.l.b16 %v189
    %v493 = vunpack.c.h.b16 %v189
    %v494 = vunpack.c.l.b16 %v190
    %v495 = vunpack.c.h.b16 %v190
    %v496 = vunpack.c.l.b16 %v191
    %v497 = vunpack.c.h.b16 %v191
    %v498 = vpack.c.b16 %v304, %v302
    %v499 = vpack.c.b16 %v305, %v303
    %v500 = vpack.c.b16 %v308, %v306
    %v501 = vpack.c.b16 %v309, %v307
    %v502 = vpack.c.b16 %v312, %v310
    %v503 = vpack.c.b16 %v313, %v311
    %v504 = vpack.c.b16 %v316, %v314
    %v505 = vpack.c.b16 %v317, %v315
    %v506 = vpack.c.b16 %v320, %v318
    %v507 = vpack.c.b16 %v321, %v319
    %v508 = vpack.c.b16 %v324, %v322
    %v509 = vpack.c.b16 %v325, %v323
    %v510 = vpack.c.b16 %v328, %v326
    %v511 = vpack.c.b16 %v329, %v327
    %v512 = vpack.c.b16 %v332, %v330
    %v513 = vpack.c.b16 %v333, %v331
    %v514 = vpack.c.b16 %v336, %v334
    %v515 = vpack.c.b16 %v337, %v335
    %v516 = vpack.c.b16 %v340, %v338
    %v517 = vpack.c.b16 %v341, %v339
    %v518 = vpack.c.b16 %v344, %v342
    %v519 = vpack.c.b16 %v345, %v343
    %v520 = vpack.c.b16 %v348, %v346
    %v521 = vpack.c.b16 %v349, %v347
    %v522 = vpack.c.b16 %v352, %v350
    %v523 = vpack.c.b16 %v353, %v351
    %v524 = vpack.c.b16 %v356, %v354
    %v525 = vpack.c.b16 %v357, %v355
    %v526 = vpack.c.b16 %v360, %v358
    %v527 = vpack.c.b16 %v361, %v359
    %v528 = vpack.c.b16 %v364, %v362
    %v529 = vpack.c.b16 %v365, %v363
    %v530 = vpack.c.b16 %v368, %v366
    %v531 = vpack.c.b16 %v369, %v367
    %v532 = vpack.c.b16 %v372, %v370
    %v533 = vpack.c.b16 %v373, %v371
    %v534 = vpack.c.b16 %v376, %v374
    %v535 = vpack.c.b16 %v377, %v375
    %v536 = vpack.c.b16 %v380, %v378
    %v537 = vpack.c.b16 %v381, %v379
    %v538 = vpack.c.b16 %v384, %v382
    %v539 = vpack.c.b16 %v385, %v383
    %v540 = vpack.c.b16 %v388, %v386
    %v541 = vpack.c.b16 %v389, %v387
    %v542 = vpack.c.b16 %v392, %v390
    %v543 = vpack.c.b16 %v393, %v391
    %v544 = vpack.c.b16 %v396, %v394
    %v545 = vpack.c.b16 %v397, %v395
    %v546 = vpack.c.b16 %v400, %v398
    %v547 = vpack.c.b16 %v401, %v399
    %v548 = vpack.c.b16 %v404, %v402
    %v549 = vpack.c.b16 %v405, %v403
    %v550 = vpack.c.b16 %v408, %v406
    %v551 = vpack.c.b16 %v409, %v407
    %v552 = vpack.c.b16 %v412, %v410
    %v553 = vpack.c.b16 %v413, %v411
    %v554 = vpack.c.b16 %v416, %v414
    %v555 = vpack.c.b16 %v417, %v415
    %v556 = vpack.c.b16 %v420, %v418
    %v557 = vpack.c.b16 %v421, %v419
    %v558 = vpack.c.b16 %v424, %v422
    %v559 = vpack.c.b16 %v425, %v423
    %v560 = vpack.c.b16 %v428, %v426
    %v561 = vpack.c.b16 %v429, %v427
    %v562 = vpack.c.b16 %v432, %v430
    %v563 = vpack.c.b16 %v433, %v431
    %v564 = vpack.c.b16 %v436, %v434
    %v565 = vpack.c.b16 %v437, %v435
    %v566 = vpack.c.b16 %v440, %v438
    %v567 = vpack.c.b16 %v441, %v439
    %v568 = vpack.c.b16 %v444, %v442
    %v569 = vpack.c.b16 %v445, %v443
    %v570 = vpack.c.b16 %v448, %v446
    %v571 = vpack.c.b16 %v449, %v447
    %v572 = vpack.c.b16 %v452, %v450
    %v573 = vpack.c.b16 %v453, %v451
    %v574 = vpack.c.b16 %v456, %v454
    %v575 = vpack.c.b16 %v457, %v455
    %v576 = vpack.c.b16 %v460, %v458
    %v577 = vpack.c.b16 %v461, %v459
    %v578 = vpack.c.b16 %v464, %v462
    %v579 = vpack.c.b16 %v465, %v463
    %v580 = vpack.c.b16 %v468, %v466
    %v581 = vpack.c.b16 %v469, %v467
    %v582 = vpack.c.b16 %v472, %v470
    %v583 = vpack.c.b16 %v473, %v471
    %v584 = vpack.c.b16 %v476, %v474
    %v585 = vpack.c.b16 %v477, %v475
    %v586 = vpack.c.b16 %v480, %v478
    %v587 = vpack.c.b16 %v481, %v479
    %v588 = vpack.c.b16 %v484, %v482
    %v589 = vpack.c.b16 %v485, %v483
    %v590 = vpack.c.b16 %v488, %v486
    %v591 = vpack.c.b16 %v489, %v487
    %v592 = vpack.c.b16 %v492, %v490
    %v593 = vpack.c.b16 %v493, %v491
    %v594 = vpack.c.b16 %v496, %v494
    %v595 = vpack.c.b16 %v497, %v495
    %vm694 = vcmask 130048
    %v696 = vsel %vm694, %v93, 0
    %698 = vmatprep.subr.bf16.mxu0 %v499
    %699 = vmatpush1.bf16.msra.mxu0 %v498
    %700 = vmatprep.subr.bf16.mxu0 %v501
    %701 = vmatpush1.bf16.msra.mxu0 %v500
    %702 = vmatprep.subr.bf16.mxu0 %v503
    %703 = vmatpush1.bf16.msra.mxu0 %v502
    %704 = vmatprep.subr.bf16.mxu0 %v505
    %705 = vmatpush1.bf16.msra.mxu0 %v504
    %706 = vmatprep.subr.bf16.mxu0 %v507
    %707 = vmatpush1.bf16.msra.mxu0 %v506
    %708 = vmatprep.subr.bf16.mxu0 %v509
    %709 = vmatpush1.bf16.msra.mxu0 %v508
    %710 = vmatprep.subr.bf16.mxu0 %v511
    %711 = vmatpush1.bf16.msra.mxu0 %v510
    %712 = vmatprep.subr.bf16.mxu0 %v513
    %713 = vmatpush1.bf16.msra.mxu0 %v512
    %714 = vmatprep.subr.bf16.mxu0 %v515
    %715 = vmatpush1.bf16.msra.mxu0 %v514
    %716 = vmatprep.subr.bf16.mxu0 %v517
    %717 = vmatpush1.bf16.msra.mxu0 %v516
    %718 = vmatprep.subr.bf16.mxu0 %v519
    %719 = vmatpush1.bf16.msra.mxu0 %v518
    %720 = vmatprep.subr.bf16.mxu0 %v521
    %721 = vmatpush1.bf16.msra.mxu0 %v520
    %722 = vmatprep.subr.bf16.mxu0 %v523
    %723 = vmatpush1.bf16.msra.mxu0 %v522
    %724 = vmatprep.subr.bf16.mxu0 %v525
    %725 = vmatpush1.bf16.msra.mxu0 %v524
    %726 = vmatprep.subr.bf16.mxu0 %v527
    %727 = vmatpush1.bf16.msra.mxu0 %v526
    %728 = vmatprep.subr.bf16.mxu0 %v529
    %729 = vmatpush1.bf16.msra.mxu0 %v528
    %730 = vmatprep.mubr.bf16.mxu0 %v88
    %731 = vmatmul.mubr.bf16.gmra.mrb[0].mxu0 %v87
    %v732 = vpop.f32.mrb[0].mxu0
    %v733 = vadd.f32 %v197, %v732
    %v734 = vpop.f32.mrb[0].mxu0
    %v735 = vadd.f32 %v201, %v734
    %v736 = vpop.f32.mrb[0].mxu0
    %v737 = vpop.f32.mrb[0].mxu0
    %738 = vdwg.mxu0
    %739 = vmatprep.subr.bf16.mxu0 %v531
    %740 = vmatpush1.bf16.msra.mxu0 %v530
    %741 = vmatprep.subr.bf16.mxu0 %v533
    %742 = vmatpush1.bf16.msra.mxu0 %v532
    %743 = vmatprep.subr.bf16.mxu0 %v535
    %744 = vmatpush1.bf16.msra.mxu0 %v534
    %745 = vmatprep.subr.bf16.mxu0 %v537
    %746 = vmatpush1.bf16.msra.mxu0 %v536
    %747 = vmatprep.subr.bf16.mxu0 %v539
    %748 = vmatpush1.bf16.msra.mxu0 %v538
    %749 = vmatprep.subr.bf16.mxu0 %v541
    %750 = vmatpush1.bf16.msra.mxu0 %v540
    %751 = vmatprep.subr.bf16.mxu0 %v543
    %752 = vmatpush1.bf16.msra.mxu0 %v542
    %753 = vmatprep.subr.bf16.mxu0 %v545
    %754 = vmatpush1.bf16.msra.mxu0 %v544
    %755 = vmatprep.subr.bf16.mxu0 %v547
    %756 = vmatpush1.bf16.msra.mxu0 %v546
    %757 = vmatprep.subr.bf16.mxu0 %v549
    %758 = vmatpush1.bf16.msra.mxu0 %v548
    %759 = vmatprep.subr.bf16.mxu0 %v551
    %760 = vmatpush1.bf16.msra.mxu0 %v550
    %761 = vmatprep.subr.bf16.mxu0 %v553
    %762 = vmatpush1.bf16.msra.mxu0 %v552
    %763 = vmatprep.subr.bf16.mxu0 %v555
    %764 = vmatpush1.bf16.msra.mxu0 %v554
    %765 = vmatprep.subr.bf16.mxu0 %v557
    %766 = vmatpush1.bf16.msra.mxu0 %v556
    %767 = vmatprep.subr.bf16.mxu0 %v559
    %768 = vmatpush1.bf16.msra.mxu0 %v558
    %769 = vmatprep.subr.bf16.mxu0 %v561
    %770 = vmatpush1.bf16.msra.mxu0 %v560
    %771 = vmatprep.mubr.bf16.mxu0 %v90
    %772 = vmatmul.mubr.bf16.gmra.mrb[0].mxu0 %v89
    %v773 = vpop.f32.mrb[0].mxu0
    %v774 = vadd.f32 %v733, %v773
    %v775 = vpop.f32.mrb[0].mxu0
    %v776 = vadd.f32 %v735, %v775
    %v777 = vpop.f32.mrb[0].mxu0
    %v778 = vpop.f32.mrb[0].mxu0
    %779 = vdwg.mxu0
    %780 = vmatprep.subr.bf16.mxu0 %v563
    %781 = vmatpush1.bf16.msra.mxu0 %v562
    %782 = vmatprep.subr.bf16.mxu0 %v565
    %783 = vmatpush1.bf16.msra.mxu0 %v564
    %784 = vmatprep.subr.bf16.mxu0 %v567
    %785 = vmatpush1.bf16.msra.mxu0 %v566
    %786 = vmatprep.subr.bf16.mxu0 %v569
    %787 = vmatpush1.bf16.msra.mxu0 %v568
    %788 = vmatprep.subr.bf16.mxu0 %v571
    %789 = vmatpush1.bf16.msra.mxu0 %v570
    %790 = vmatprep.subr.bf16.mxu0 %v573
    %791 = vmatpush1.bf16.msra.mxu0 %v572
    %792 = vmatprep.subr.bf16.mxu0 %v575
    %793 = vmatpush1.bf16.msra.mxu0 %v574
    %794 = vmatprep.subr.bf16.mxu0 %v577
    %795 = vmatpush1.bf16.msra.mxu0 %v576
    %796 = vmatprep.subr.bf16.mxu0 %v579
    %797 = vmatpush1.bf16.msra.mxu0 %v578
    %798 = vmatprep.subr.bf16.mxu0 %v581
    %799 = vmatpush1.bf16.msra.mxu0 %v580
    %800 = vmatprep.subr.bf16.mxu0 %v583
    %801 = vmatpush1.bf16.msra.mxu0 %v582
    %802 = vmatprep.subr.bf16.mxu0 %v585
    %803 = vmatpush1.bf16.msra.mxu0 %v584
    %804 = vmatprep.subr.bf16.mxu0 %v587
    %805 = vmatpush1.bf16.msra.mxu0 %v586
    %806 = vmatprep.subr.bf16.mxu0 %v589
    %807 = vmatpush1.bf16.msra.mxu0 %v588
    %808 = vmatprep.subr.bf16.mxu0 %v591
    %809 = vmatpush1.bf16.msra.mxu0 %v590
    %810 = vmatprep.subr.bf16.mxu0 %v593
    %811 = vmatpush1.bf16.msra.mxu0 %v592
    %812 = vmatprep.mubr.bf16.mxu0 %v92
    %813 = vmatmul.mubr.bf16.gmra.mrb[0].mxu0 %v91
    %v814 = vpop.f32.mrb[0].mxu0
    %v815 = vadd.f32 %v774, %v814
    %v816 = vpop.f32.mrb[0].mxu0
    %v817 = vadd.f32 %v776, %v816
    %v818 = vpop.f32.mrb[0].mxu0
    %v819 = vpop.f32.mrb[0].mxu0
    %820 = vdwg.mxu0
    %821 = vmatprep.subr.bf16.mxu0 %v595
    %822 = vmatpush1.bf16.msra.mxu0 %v594
    %823 = vmatprep.subr.bf16.mxu0 0
    %824 = vmatpush1.bf16.msra.mxu0 0
    %825 = vmatprep.subr.bf16.mxu0 0
    %826 = vmatpush1.bf16.msra.mxu0 0
    %827 = vmatprep.subr.bf16.mxu0 0
    %828 = vmatpush1.bf16.msra.mxu0 0
    %829 = vmatprep.subr.bf16.mxu0 0
    %830 = vmatpush1.bf16.msra.mxu0 0
    %831 = vmatprep.subr.bf16.mxu0 0
    %832 = vmatpush1.bf16.msra.mxu0 0
    %833 = vmatprep.subr.bf16.mxu0 0
    %834 = vmatpush1.bf16.msra.mxu0 0
    %835 = vmatprep.subr.bf16.mxu0 0
    %836 = vmatpush1.bf16.msra.mxu0 0
    %837 = vmatprep.subr.bf16.mxu0 0
    %838 = vmatpush1.bf16.msra.mxu0 0
    %839 = vmatprep.subr.bf16.mxu0 0
    %840 = vmatpush1.bf16.msra.mxu0 0
    %841 = vmatprep.subr.bf16.mxu0 0
    %842 = vmatpush1.bf16.msra.mxu0 0
    %843 = vmatprep.subr.bf16.mxu0 0
    %844 = vmatpush1.bf16.msra.mxu0 0
    %845 = vmatprep.subr.bf16.mxu0 0
    %846 = vmatpush1.bf16.msra.mxu0 0
    %847 = vmatprep.subr.bf16.mxu0 0
    %848 = vmatpush1.bf16.msra.mxu0 0
    %849 = vmatprep.subr.bf16.mxu0 0
    %850 = vmatpush1.bf16.msra.mxu0 0
    %851 = vmatprep.subr.bf16.mxu0 0
    %852 = vmatpush1.bf16.msra.mxu0 0
    %853 = vmatprep.mubr.bf16.mxu0 0
    %854 = vmatmul.mubr.bf16.gmra.mrb[0].mxu0 %v696
    %v855 = vpop.f32.mrb[0].mxu0
    %v856 = vadd.f32 %v815, %v855
    %v857 = vpop.f32.mrb[0].mxu0
    %v858 = vadd.f32 %v817, %v857
    %v859 = vpop.f32.mrb[0].mxu0
    %v860 = vpop.f32.mrb[0].mxu0
    %861 = vdwg.mxu0
    %vm862 = vcmp.gt.f32.partialorder %v856, 0.0
    %vm863 = vcmp.gt.f32.partialorder %v858, 0.0
    %v864 = vmul.f32 %v856, 0.01
    %v865 = vmul.f32 %v858, 0.01
    %v866 = vsel %vm862, %v856, %v864
    %v867 = vsel %vm863, %v858, %v865
    %v868 = vpack.c.bf16 %v866, %v866
    %v869 = vpack.c.bf16 %v867, %v867
    %v870 = vld [vmem:[#allocation6] sm:$0xff]
    %v871 = vld [vmem:[#allocation6 + $0x8] sm:$0xff]
    %v872 = vld [vmem:[#allocation6 + $0x10] sm:$0xff]
    %v873 = vld [vmem:[#allocation6 + $0x18] sm:$0xff]
    %v874 = vld [vmem:[#allocation6 + $0x20] sm:$0xff]
    %v875 = vld [vmem:[#allocation6 + $0x28] sm:$0xff]
    %v876 = vld [vmem:[#allocation6 + $0x30] sm:$0xff]
    %v877 = vld [vmem:[#allocation6 + $0x38] sm:$0xff]
    %v878 = vld [vmem:[#allocation6 + $0x40] sm:$0xff]
    %v879 = vld [vmem:[#allocation6 + $0x48] sm:$0xff]
    %v880 = vld [vmem:[#allocation6 + $0x50] sm:$0xff]
    %v881 = vld [vmem:[#allocation6 + $0x58] sm:$0xff]
    %v882 = vld [vmem:[#allocation6 + $0x60] sm:$0xff]
    %v883 = vld [vmem:[#allocation6 + $0x68] sm:$0xff]
    %v884 = vld [vmem:[#allocation6 + $0x70] sm:$0xff]
    %v885 = vld [vmem:[#allocation6 + $0x78] sm:$0xff]
    %v886 = vld [vmem:[#allocation6 + $0x80] sm:$0xff]
    %v887 = vld [vmem:[#allocation6 + $0x88] sm:$0xff]
    %v888 = vld [vmem:[#allocation6 + $0x90] sm:$0xff]
    %v889 = vld [vmem:[#allocation6 + $0x98] sm:$0xff]
    %v890 = vld [vmem:[#allocation6 + $0xa0] sm:$0xff]
    %v891 = vld [vmem:[#allocation6 + $0xa8] sm:$0xff]
    %v892 = vld [vmem:[#allocation6 + $0xb0] sm:$0xff]
    %v893 = vld [vmem:[#allocation6 + $0xb8] sm:$0xff]
    %v894 = vld [vmem:[#allocation6 + $0xc0] sm:$0xff]
    %v895 = vld [vmem:[#allocation6 + $0xc8] sm:$0xff]
    %v896 = vld [vmem:[#allocation6 + $0xd0] sm:$0xff]
    %v897 = vld [vmem:[#allocation6 + $0xd8] sm:$0xff]
    %v898 = vld [vmem:[#allocation6 + $0xe0] sm:$0xff]
    %v899 = vld [vmem:[#allocation6 + $0xe8] sm:$0xff]
    %v900 = vld [vmem:[#allocation6 + $0xf0] sm:$0xff]
    %v901 = vld [vmem:[#allocation6 + $0xf8] sm:$0xff]
    %v902 = vld [vmem:[%s4] sm:$0x3]
    %v904 = vlaneseq
    %v905 = vshrl.u32 %v904, 7
    %v906 = vsub.s32 0, %v905
    %v907 = vrot.slane %v902, %v906
    %v908 = vlaneseq
    %v909 = vshrl.u32 %v908, 7
    %v910 = vsub.s32 1, %v909
    %v911 = vrot.slane %v902, %v910
    %v946 = vunpack.c.l.b16 %v870
    %v947 = vunpack.c.h.b16 %v870
    %v948 = vunpack.c.l.b16 %v871
    %v949 = vunpack.c.h.b16 %v871
    %v950 = vunpack.c.l.b16 %v872
    %v951 = vunpack.c.h.b16 %v872
    %v952 = vunpack.c.l.b16 %v873
    %v953 = vunpack.c.h.b16 %v873
    %v954 = vunpack.c.l.b16 %v874
    %v955 = vunpack.c.h.b16 %v874
    %v956 = vunpack.c.l.b16 %v875
    %v957 = vunpack.c.h.b16 %v875
    %v958 = vunpack.c.l.b16 %v876
    %v959 = vunpack.c.h.b16 %v876
    %v960 = vunpack.c.l.b16 %v877
    %v961 = vunpack.c.h.b16 %v877
    %v962 = vunpack.c.l.b16 %v878
    %v963 = vunpack.c.h.b16 %v878
    %v964 = vunpack.c.l.b16 %v879
    %v965 = vunpack.c.h.b16 %v879
    %v966 = vunpack.c.l.b16 %v880
    %v967 = vunpack.c.h.b16 %v880
    %v968 = vunpack.c.l.b16 %v881
    %v969 = vunpack.c.h.b16 %v881
    %v970 = vunpack.c.l.b16 %v882
    %v971 = vunpack.c.h.b16 %v882
    %v972 = vunpack.c.l.b16 %v883
    %v973 = vunpack.c.h.b16 %v883
    %v974 = vunpack.c.l.b16 %v884
    %v975 = vunpack.c.h.b16 %v884
    %v976 = vunpack.c.l.b16 %v885
    %v977 = vunpack.c.h.b16 %v885
    %v978 = vunpack.c.l.b16 %v886
    %v979 = vunpack.c.h.b16 %v886
    %v980 = vunpack.c.l.b16 %v887
    %v981 = vunpack.c.h.b16 %v887
    %v982 = vunpack.c.l.b16 %v888
    %v983 = vunpack.c.h.b16 %v888
    %v984 = vunpack.c.l.b16 %v889
    %v985 = vunpack.c.h.b16 %v889
    %v986 = vunpack.c.l.b16 %v890
    %v987 = vunpack.c.h.b16 %v890
    %v988 = vunpack.c.l.b16 %v891
    %v989 = vunpack.c.h.b16 %v891
    %v990 = vunpack.c.l.b16 %v892
    %v991 = vunpack.c.h.b16 %v892
    %v992 = vunpack.c.l.b16 %v893
    %v993 = vunpack.c.h.b16 %v893
    %v994 = vunpack.c.l.b16 %v894
    %v995 = vunpack.c.h.b16 %v894
    %v996 = vunpack.c.l.b16 %v895
    %v997 = vunpack.c.h.b16 %v895
    %v998 = vunpack.c.l.b16 %v896
    %v999 = vunpack.c.h.b16 %v896
    %v1000 = vunpack.c.l.b16 %v897
    %v1001 = vunpack.c.h.b16 %v897
    %v1002 = vunpack.c.l.b16 %v898
    %v1003 = vunpack.c.h.b16 %v898
    %v1004 = vunpack.c.l.b16 %v899
    %v1005 = vunpack.c.h.b16 %v899
    %v1006 = vunpack.c.l.b16 %v900
    %v1007 = vunpack.c.h.b16 %v900
    %v1008 = vunpack.c.l.b16 %v901
    %v1009 = vunpack.c.h.b16 %v901
    %v1010 = vpack.c.b16 %v948, %v946
    %v1011 = vpack.c.b16 %v949, %v947
    %v1012 = vpack.c.b16 %v952, %v950
    %v1013 = vpack.c.b16 %v953, %v951
    %v1014 = vpack.c.b16 %v956, %v954
    %v1015 = vpack.c.b16 %v957, %v955
    %v1016 = vpack.c.b16 %v960, %v958
    %v1017 = vpack.c.b16 %v961, %v959
    %v1018 = vpack.c.b16 %v964, %v962
    %v1019 = vpack.c.b16 %v965, %v963
    %v1020 = vpack.c.b16 %v968, %v966
    %v1021 = vpack.c.b16 %v969, %v967
    %v1022 = vpack.c.b16 %v972, %v970
    %v1023 = vpack.c.b16 %v973, %v971
    %v1024 = vpack.c.b16 %v976, %v974
    %v1025 = vpack.c.b16 %v977, %v975
    %v1026 = vpack.c.b16 %v980, %v978
    %v1027 = vpack.c.b16 %v981, %v979
    %v1028 = vpack.c.b16 %v984, %v982
    %v1029 = vpack.c.b16 %v985, %v983
    %v1030 = vpack.c.b16 %v988, %v986
    %v1031 = vpack.c.b16 %v989, %v987
    %v1032 = vpack.c.b16 %v992, %v990
    %v1033 = vpack.c.b16 %v993, %v991
    %v1034 = vpack.c.b16 %v996, %v994
    %v1035 = vpack.c.b16 %v997, %v995
    %v1036 = vpack.c.b16 %v1000, %v998
    %v1037 = vpack.c.b16 %v1001, %v999
    %v1038 = vpack.c.b16 %v1004, %v1002
    %v1039 = vpack.c.b16 %v1005, %v1003
    %v1040 = vpack.c.b16 %v1008, %v1006
    %v1041 = vpack.c.b16 %v1009, %v1007
    %1074 = vmatprep.subr.bf16.mxu0 %v1011
    %1075 = vmatpush1.bf16.msra.mxu0 %v1010
    %1076 = vmatprep.subr.bf16.mxu0 %v1013
    %1077 = vmatpush1.bf16.msra.mxu0 %v1012
    %1078 = vmatprep.subr.bf16.mxu0 %v1015
    %1079 = vmatpush1.bf16.msra.mxu0 %v1014
    %1080 = vmatprep.subr.bf16.mxu0 %v1017
    %1081 = vmatpush1.bf16.msra.mxu0 %v1016
    %1082 = vmatprep.subr.bf16.mxu0 %v1019
    %1083 = vmatpush1.bf16.msra.mxu0 %v1018
    %1084 = vmatprep.subr.bf16.mxu0 %v1021
    %1085 = vmatpush1.bf16.msra.mxu0 %v1020
    %1086 = vmatprep.subr.bf16.mxu0 %v1023
    %1087 = vmatpush1.bf16.msra.mxu0 %v1022
    %1088 = vmatprep.subr.bf16.mxu0 %v1025
    %1089 = vmatpush1.bf16.msra.mxu0 %v1024
    %1090 = vmatprep.subr.bf16.mxu0 %v1027
    %1091 = vmatpush1.bf16.msra.mxu0 %v1026
    %1092 = vmatprep.subr.bf16.mxu0 %v1029
    %1093 = vmatpush1.bf16.msra.mxu0 %v1028
    %1094 = vmatprep.subr.bf16.mxu0 %v1031
    %1095 = vmatpush1.bf16.msra.mxu0 %v1030
    %1096 = vmatprep.subr.bf16.mxu0 %v1033
    %1097 = vmatpush1.bf16.msra.mxu0 %v1032
    %1098 = vmatprep.subr.bf16.mxu0 %v1035
    %1099 = vmatpush1.bf16.msra.mxu0 %v1034
    %1100 = vmatprep.subr.bf16.mxu0 %v1037
    %1101 = vmatpush1.bf16.msra.mxu0 %v1036
    %1102 = vmatprep.subr.bf16.mxu0 %v1039
    %1103 = vmatpush1.bf16.msra.mxu0 %v1038
    %1104 = vmatprep.subr.bf16.mxu0 %v1041
    %1105 = vmatpush1.bf16.msra.mxu0 %v1040
    %1106 = vmatprep.mubr.bf16.mxu0 %v869
    %1107 = vmatmul.mubr.bf16.gmra.mrb[0].mxu0 %v868
    %v1108 = vpop.f32.mrb[0].mxu0
    %v1109 = vadd.f32 %v907, %v1108
    %v1110 = vpop.f32.mrb[0].mxu0
    %v1111 = vadd.f32 %v911, %v1110
    %v1112 = vpop.f32.mrb[0].mxu0
    %v1113 = vpop.f32.mrb[0].mxu0
    %1114 = vdwg.mxu0
    %vm1115 = vcmp.gt.f32.partialorder %v1109, 0.0
    %vm1116 = vcmp.gt.f32.partialorder %v1111, 0.0
    %v1117 = vmul.f32 %v1109, 0.01
    %v1118 = vmul.f32 %v1111, 0.01
    %v1119 = vsel %vm1115, %v1109, %v1117
    %v1120 = vsel %vm1116, %v1111, %v1118
    %v1121 = vpack.c.bf16 %v1119, %v1119
    %v1122 = vpack.c.bf16 %v1120, %v1120
    %v1123 = vld [vmem:[#allocation7] sm:$0xf]
    %v1124 = vld [vmem:[#allocation7 + $0x4] sm:$0xf]
    %v1125 = vld [vmem:[#allocation7 + $0x8] sm:$0xf]
    %v1126 = vld [vmem:[#allocation7 + $0xc] sm:$0xf]
    %v1127 = vld [vmem:[#allocation7 + $0x10] sm:$0xf]
    %v1128 = vld [vmem:[#allocation7 + $0x14] sm:$0xf]
    %v1129 = vld [vmem:[#allocation7 + $0x18] sm:$0xf]
    %v1130 = vld [vmem:[#allocation7 + $0x1c] sm:$0xf]
    %v1131 = vld [vmem:[#allocation7 + $0x20] sm:$0xf]
    %v1132 = vld [vmem:[#allocation7 + $0x24] sm:$0xf]
    %v1133 = vld [vmem:[#allocation7 + $0x28] sm:$0xf]
    %v1134 = vld [vmem:[#allocation7 + $0x2c] sm:$0xf]
    %v1135 = vld [vmem:[#allocation7 + $0x30] sm:$0xf]
    %v1136 = vld [vmem:[#allocation7 + $0x34] sm:$0xf]
    %v1137 = vld [vmem:[#allocation7 + $0x38] sm:$0xf]
    %v1138 = vld [vmem:[#allocation7 + $0x3c] sm:$0xf]
    %v1139 = vld [vmem:[#allocation7 + $0x40] sm:$0xf]
    %v1140 = vld [vmem:[#allocation7 + $0x44] sm:$0xf]
    %v1141 = vld [vmem:[#allocation7 + $0x48] sm:$0xf]
    %v1142 = vld [vmem:[#allocation7 + $0x4c] sm:$0xf]
    %v1143 = vld [vmem:[#allocation7 + $0x50] sm:$0xf]
    %v1144 = vld [vmem:[#allocation7 + $0x54] sm:$0xf]
    %v1145 = vld [vmem:[#allocation7 + $0x58] sm:$0xf]
    %v1146 = vld [vmem:[#allocation7 + $0x5c] sm:$0xf]
    %v1147 = vld [vmem:[#allocation7 + $0x60] sm:$0xf]
    %v1148 = vld [vmem:[#allocation7 + $0x64] sm:$0xf]
    %v1149 = vld [vmem:[#allocation7 + $0x68] sm:$0xf]
    %v1150 = vld [vmem:[#allocation7 + $0x6c] sm:$0xf]
    %v1151 = vld [vmem:[#allocation7 + $0x70] sm:$0xf]
    %v1152 = vld [vmem:[#allocation7 + $0x74] sm:$0xf]
    %v1153 = vld [vmem:[#allocation7 + $0x78] sm:$0xf]
    %v1154 = vld [vmem:[#allocation7 + $0x7c] sm:$0xf]
    %v1155 = vld [vmem:[%s6] sm:$0x1]
    %v1157 = vlaneseq
    %v1158 = vshrl.u32 %v1157, 7
    %v1159 = vsub.s32 0, %v1158
    %v1160 = vrot.slane %v1155, %v1159
    %v1194 = vunpack.c.l.b16 %v1123
    %v1195 = vunpack.c.l.b16 %v1124
    %v1196 = vunpack.c.l.b16 %v1125
    %v1197 = vunpack.c.l.b16 %v1126
    %v1198 = vunpack.c.l.b16 %v1127
    %v1199 = vunpack.c.l.b16 %v1128
    %v1200 = vunpack.c.l.b16 %v1129
    %v1201 = vunpack.c.l.b16 %v1130
    %v1202 = vunpack.c.l.b16 %v1131
    %v1203 = vunpack.c.l.b16 %v1132
    %v1204 = vunpack.c.l.b16 %v1133
    %v1205 = vunpack.c.l.b16 %v1134
    %v1206 = vunpack.c.l.b16 %v1135
    %v1207 = vunpack.c.l.b16 %v1136
    %v1208 = vunpack.c.l.b16 %v1137
    %v1209 = vunpack.c.l.b16 %v1138
    %v1210 = vunpack.c.l.b16 %v1139
    %v1211 = vunpack.c.l.b16 %v1140
    %v1212 = vunpack.c.l.b16 %v1141
    %v1213 = vunpack.c.l.b16 %v1142
    %v1214 = vunpack.c.l.b16 %v1143
    %v1215 = vunpack.c.l.b16 %v1144
    %v1216 = vunpack.c.l.b16 %v1145
    %v1217 = vunpack.c.l.b16 %v1146
    %v1218 = vunpack.c.l.b16 %v1147
    %v1219 = vunpack.c.l.b16 %v1148
    %v1220 = vunpack.c.l.b16 %v1149
    %v1221 = vunpack.c.l.b16 %v1150
    %v1222 = vunpack.c.l.b16 %v1151
    %v1223 = vunpack.c.l.b16 %v1152
    %v1224 = vunpack.c.l.b16 %v1153
    %v1225 = vunpack.c.l.b16 %v1154
    %v1226 = vpack.c.b16 %v1195, %v1194
    %v1227 = vpack.c.b16 %v1197, %v1196
    %v1228 = vpack.c.b16 %v1199, %v1198
    %v1229 = vpack.c.b16 %v1201, %v1200
    %v1230 = vpack.c.b16 %v1203, %v1202
    %v1231 = vpack.c.b16 %v1205, %v1204
    %v1232 = vpack.c.b16 %v1207, %v1206
    %v1233 = vpack.c.b16 %v1209, %v1208
    %v1234 = vpack.c.b16 %v1211, %v1210
    %v1235 = vpack.c.b16 %v1213, %v1212
    %v1236 = vpack.c.b16 %v1215, %v1214
    %v1237 = vpack.c.b16 %v1217, %v1216
    %v1238 = vpack.c.b16 %v1219, %v1218
    %v1239 = vpack.c.b16 %v1221, %v1220
    %v1240 = vpack.c.b16 %v1223, %v1222
    %v1241 = vpack.c.b16 %v1225, %v1224
    %1258 = vmatprep.subr.bf16.mxu0 0
    %1259 = vmatpush1.bf16.msra.mxu0 %v1226
    %1260 = vmatprep.subr.bf16.mxu0 0
    %1261 = vmatpush1.bf16.msra.mxu0 %v1227
    %1262 = vmatprep.subr.bf16.mxu0 0
    %1263 = vmatpush1.bf16.msra.mxu0 %v1228
    %1264 = vmatprep.subr.bf16.mxu0 0
    %1265 = vmatpush1.bf16.msra.mxu0 %v1229
    %1266 = vmatprep.subr.bf16.mxu0 0
    %1267 = vmatpush1.bf16.msra.mxu0 %v1230
    %1268 = vmatprep.subr.bf16.mxu0 0
    %1269 = vmatpush1.bf16.msra.mxu0 %v1231
    %1270 = vmatprep.subr.bf16.mxu0 0
    %1271 = vmatpush1.bf16.msra.mxu0 %v1232
    %1272 = vmatprep.subr.bf16.mxu0 0
    %1273 = vmatpush1.bf16.msra.mxu0 %v1233
    %1274 = vmatprep.subr.bf16.mxu0 0
    %1275 = vmatpush1.bf16.msra.mxu0 %v1234
    %1276 = vmatprep.subr.bf16.mxu0 0
    %1277 = vmatpush1.bf16.msra.mxu0 %v1235
    %1278 = vmatprep.subr.bf16.mxu0 0
    %1279 = vmatpush1.bf16.msra.mxu0 %v1236
    %1280 = vmatprep.subr.bf16.mxu0 0
    %1281 = vmatpush1.bf16.msra.mxu0 %v1237
    %1282 = vmatprep.subr.bf16.mxu0 0
    %1283 = vmatpush1.bf16.msra.mxu0 %v1238
    %1284 = vmatprep.subr.bf16.mxu0 0
    %1285 = vmatpush1.bf16.msra.mxu0 %v1239
    %1286 = vmatprep.subr.bf16.mxu0 0
    %1287 = vmatpush1.bf16.msra.mxu0 %v1240
    %1288 = vmatprep.subr.bf16.mxu0 0
    %1289 = vmatpush1.bf16.msra.mxu0 %v1241
    %1290 = vmatprep.mubr.bf16.mxu0 %v1122
    %1291 = vmatmul.mubr.bf16.gmra.mrb[0].mxu0 %v1121
    %v1292 = vpop.f32.mrb[0].mxu0
    %v1293 = vadd.f32 %v1160, %v1292
    %v1294 = vpop.f32.mrb[0].mxu0
    %v1295 = vpop.f32.mrb[0].mxu0
    %v1296 = vpop.f32.mrb[0].mxu0
    %1297 = vdwg.mxu0
    %vm1298 = vcmp.gt.f32.partialorder %v1293, 0.0
    %v1299 = vmul.f32 %v1293, 0.01
    %v1300 = vsel %vm1298, %v1293, %v1299
    %v1301 = vpack.c.bf16 %v1300, %v1300
    %1302 = vst [vmem:[%s7] sm:$0xf] %v1301
    // Predicated region
    $region46: #{mlp_forward.1} parent=1 // pred_check
      _
    $region47: #{mlp_forward.1} parent=1 // pred_check_branch
      %1304 = sbr.rel (0) target = $region49
    $region48: #{mlp_forward.1} parent=1 // pred_region
      _
    $region49: #{mlp_forward.1} parent=1 // pred_fallthru
      _
    // Predicated region
    $region50: #{mlp_forward.1} parent=1 // pred_check
      _
    $region51: #{mlp_forward.1} parent=1 // pred_check_branch
      %1306 = sbr.rel (0) target = $region53
    $region52: #{mlp_forward.1} parent=1 // pred_region
      _
    $region53: #{mlp_forward.1} parent=1 // pred_fallthru
      _
    %1307 = vsyncpa [#allocation3], 1
    %1308 = vsyncpa [#allocation5], 1
    %1309 = vsyncpa [#allocation8], 1

</llo_original>
